<compile_context>
chip_gen: v6e
topology: v6e:2x2x1
jax: 0.10.0
libtpu: 0.0.40
codegen_flags: <defaults>
</compile_context>

<pallas_src>
import functools

import jax
import jax.numpy as jnp
from jax.experimental import pallas as pl
from jax.experimental.pallas import tpu as pltpu

GAMMA = 2.0
ALPHA = 0.25


def _round_up(x, m):
    return (x + m - 1) // m * m


def _cdiv(a, b):
    return (a + b - 1) // b


def _focal_weight(u, gamma):
    """(1 - pt)**gamma, specialised to repeated multiplies for small int gamma."""
    g = float(gamma)
    if g == int(g) and 0 <= int(g) <= 8:
        n = int(g)
        if n == 0:
            return jnp.ones_like(u)
        w = u
        for _ in range(n - 1):
            w = w * u            # gamma=2 -> u*u: VPU only, no pow on the EUP
        return w
    return jnp.power(u, gamma)


def _focal_loss_kernel(x_ref, y_ref, o_ref, *, alpha, gamma, m_rows, n_cols,
                       need_row_mask, need_col_mask, hard_labels,
                       approx_reciprocal):
    tm, tn = x_ref.shape
    x = x_ref[...].astype(jnp.float32)
    y = y_ref[...].astype(jnp.float32)

    # Numerically-stable BCEWithLogitsLoss (reduction='none'):
    #   bce = max(x, 0) - x*y + log1p(exp(-|x|))
    z = jnp.exp(-jnp.abs(x))                              # EUP #1
    bce = jnp.maximum(x, 0.0) - x * y + jnp.log1p(z)      # EUP #2

    if hard_labels:
        # For y in {0,1}: exp(-bce) == select(...) / (1 + z) exactly.
        # Saves the third transcendental (matters on v7x where the single EUP
        # slot can bind before HBM at 3 exps/element).
        pos = x >= 0.0
        num = jnp.where(y >= 0.5,
                        jnp.where(pos, 1.0, z),
                        jnp.where(pos, z, 1.0))
        denom = 1.0 + z
        if approx_reciprocal:
            pt = num * pl.reciprocal(denom, approx=True)  # EUP vrcp (cheap)
        else:
            pt = num / denom
    else:
        pt = jnp.exp(-bce)                                # EUP #3 (soft labels)

    u = jnp.maximum(1.0 - pt, 0.0)          # clamp: NaN-proof for fractional gamma
    focal = alpha * _focal_weight(u, gamma) * bce

    # Mask ragged tails (OOB block regions hold unspecified data).
    mask = None
    if need_row_mask:
        rid = pl.program_id(0) * tm + jax.lax.broadcasted_iota(jnp.int32, (tm, tn), 0)
        mask = rid < m_rows
    if need_col_mask:
        cid = pl.program_id(1) * tn + jax.lax.broadcasted_iota(jnp.int32, (tm, tn), 1)
        cmask = cid < n_cols
        mask = cmask if mask is None else (mask & cmask)
    if mask is not None:
        focal = jnp.where(mask, focal, 0.0)

    # Per-block lane-dense partial sum; scalar reduce + mean happen once outside.
    o_ref[...] = jnp.sum(focal, axis=0)[None, None, :]


def focal_loss(outputs, labels, *, gamma=GAMMA, alpha=ALPHA,
               hard_labels=False, approx_reciprocal=False,
               target_tile_bytes=4 << 20):
    """Pallas TPU focal loss. outputs/labels: same shape, any rank, float dtype.

    hard_labels=True enables the 2-transcendental pt path (valid only for
    labels in {0,1}); approx_reciprocal=True additionally uses the approximate
    EUP reciprocal (tiny relative error, v7x EUP relief).
    """
    assert outputs.shape == labels.shape
    if outputs.ndim == 0:
        outputs = outputs.reshape(1, 1)
        labels = labels.reshape(1, 1)
    total = outputs.size

    isz_x = jnp.dtype(outputs.dtype).itemsize
    isz_y = jnp.dtype(labels.dtype).itemsize
    isz = max(isz_x, isz_y)
    sub = max(8, 32 // min(isz_x, isz_y))      # sublane multiple: f32->8, bf16->16, i8->32
    max_block_bytes = 8 << 20                  # per-input block cap (2 in x 2 buf <= 32 MiB)

    # --- Layout: prefer a lane-dense flat slab (free bitcast reshape). ---
    W = None
    for w in (1024, 512, 256, 128):
        if total % w == 0 and (total // w) >= 2 * sub:
            W = w
            break
    if W is None:
        for w in (1024, 512, 256, 128):
            if total % w == 0:
                W = w
                break

    if W is not None:
        M_rows, N_cols = total // W, W
        tn, grid_c = W, 1
    else:
        # Zero-copy fallback: natural (rows, last_dim) view, full-width blocks.
        N_cols = outputs.shape[-1]
        M_rows = total // N_cols
        tn_pad = _round_up(N_cols, 128)
        if sub * tn_pad * isz > max_block_bytes and N_cols >= 256:
            # Extremely wide rows: tile columns too (multiple of 128, ragged tail masked).
            tn = max(128, (max_block_bytes // (sub * isz)) // 128 * 128)
            tn = min(tn, N_cols // 128 * 128)
        else:
            tn = N_cols
        grid_c = _cdiv(N_cols, tn)

    x2 = outputs.reshape(M_rows, N_cols)   # free (contiguous row-major reinterpretation)
    y2 = labels.reshape(M_rows, N_cols)

    # --- Row block size: dtype-aligned, VMEM-budgeted (lane-padded width),
    #     capped so grid_r >= 2 when possible (v7x has 2 TensorCores). ---
    tn_pad = _round_up(tn, 128)
    compute_width = max(isz, 4)            # f32 intermediates dominate VMEM footprint
    if M_rows <= sub:
        tm = M_rows                        # block == full dim (always legal)
    else:
        budget_rows = max(sub, (target_tile_bytes // (tn_pad * compute_width)) // sub * sub)
        cap_two_blocks = _round_up(_cdiv(M_rows, 2), sub)
        tm = max(sub, min(budget_rows, cap_two_blocks))
    grid_r = _cdiv(M_rows, tm)

    need_row_mask = (grid_r * tm != M_rows)
    need_col_mask = (grid_c * tn != N_cols)

    kernel = functools.partial(
        _focal_loss_kernel, alpha=float(alpha), gamma=gamma,
        m_rows=M_rows, n_cols=N_cols,
        need_row_mask=need_row_mask, need_col_mask=need_col_mask,
        hard_labels=hard_labels, approx_reciprocal=approx_reciprocal)

    n_blocks = grid_r * grid_c
    partials = pl.pallas_call(
        kernel,
        out_shape=jax.ShapeDtypeStruct((n_blocks, 1, tn), jnp.float32),
        grid_spec=pltpu.PrefetchScalarGridSpec(
            num_scalar_prefetch=0,
            grid=(grid_r, grid_c),
            in_specs=[
                pl.BlockSpec((tm, tn), lambda i, j: (i, j)),
                pl.BlockSpec((tm, tn), lambda i, j: (i, j)),
            ],
            out_specs=pl.BlockSpec((1, 1, tn), lambda i, j: (i * grid_c + j, 0, 0)),
        ),
        compiler_params=pltpu.CompilerParams(
            dimension_semantics=("parallel", "parallel"),   # megacore on v7x
            vmem_limit_bytes=48 * 1024 * 1024,
        ),
        cost_estimate=pl.CostEstimate(
            flops=12 * total,
            transcendentals=(2 if hard_labels else 3) * total,
            bytes_accessed=total * (isz_x + isz_y) + n_blocks * tn * 4,
        ),
    )(x2, y2)

    # TODO(synk): for >~1e9 elements consider compensated summation of partials.
    return jnp.sum(partials) / total


def focal_loss_ref(outputs, labels, *, gamma=GAMMA, alpha=ALPHA):
    x = outputs.astype(jnp.float32)
    y = labels.astype(jnp.float32)
    bce = jnp.maximum(x, 0.0) - x * y + jnp.log1p(jnp.exp(-jnp.abs(x)))
    pt = jnp.exp(-bce)
    return jnp.mean(alpha * (1.0 - pt) ** gamma * bce)


if __name__ == "__main__":
    key = jax.random.PRNGKey(0)
    k1, k2, k3, k4, k5, k6 = jax.random.split(key, 6)

    # Test 1: lane-dense flat path (total % 128 == 0), soft labels -> exact
    # exp(-bce) path, multi-block row grid.
    B, C = 16, 256
    logits = jax.random.normal(k1, (B, C), dtype=jnp.float32) * 2.0
    soft_labels = jax.random.uniform(k2, (B, C), dtype=jnp.float32)
    loss = jax.block_until_ready(focal_loss(logits, soft_labels))
    ref = focal_loss_ref(logits, soft_labels)
    assert jnp.allclose(loss, ref, rtol=1e-4, atol=1e-6), (loss, ref)

    # Test 2: total not a multiple of 128 -> zero-copy natural-layout fallback,
    # ragged row grid (M=13, tm=8) exercising the in-kernel row mask.
    B2, C2 = 13, 25
    logits2 = jax.random.normal(k3, (B2, C2), dtype=jnp.float32) * 2.0
    labels2 = jax.random.bernoulli(k4, p=0.3, shape=(B2, C2)).astype(jnp.float32)
    loss2 = jax.block_until_ready(focal_loss(logits2, labels2))
    ref2 = focal_loss_ref(logits2, labels2)
    assert jnp.allclose(loss2, ref2, rtol=1e-4, atol=1e-6), (loss2, ref2)

    # Test 3: hard-label fast path (2 transcendentals), exact reciprocal;
    # flat path with a ragged last row block.
    B3, C3 = 32, 96
    logits3 = jax.random.normal(k5, (B3, C3), dtype=jnp.float32) * 2.0
    labels3 = jax.random.bernoulli(k6, p=0.3, shape=(B3, C3)).astype(jnp.float32)
    loss3 = jax.block_until_ready(focal_loss(logits3, labels3, hard_labels=True))
    ref3 = focal_loss_ref(logits3, labels3)
    assert jnp.allclose(loss3, ref3, rtol=1e-4, atol=1e-6), (loss3, ref3)

    # Test 3b: hard-label path + approximate EUP reciprocal (v7x EUP relief).
    loss3b = jax.block_until_ready(
        focal_loss(logits3, labels3, hard_labels=True, approx_reciprocal=True))
    assert jnp.allclose(loss3b, ref3, rtol=1e-2, atol=1e-5), (loss3b, ref3)

    print("KERNEL_OK")
</pallas_src>

<mosaic_0001>
module attributes {stable_mosaic.version = 11 : i64} {
  func.func @_focal_loss_kernel(%arg0: i32, %arg1: i32, %arg2: memref<8x256xf32, #tpu.memory_space<vmem>>, %arg3: memref<8x256xf32, #tpu.memory_space<vmem>>, %arg4: memref<1x1x256xf32, #tpu.memory_space<vmem>>) attributes {dimension_semantics = [#tpu.dimension_semantics<parallel>, #tpu.dimension_semantics<parallel>], iteration_bounds = array<i64: 2, 1>, scalar_prefetch = 0 : i64, scratch_operands = 0 : i64, tpu.core_type = #tpu.core_type<tc>, window_params = [{transform_indices = @transform_0, window_bounds = array<i64: 8, 256>}, {transform_indices = @transform_1, window_bounds = array<i64: 8, 256>}, {transform_indices = @transform_2, window_bounds = array<i64: 1, 1, 256>}]} {
    %c0 = arith.constant 0 : index
    %c0_0 = arith.constant 0 : index
    %0 = vector.load %arg2[%c0, %c0_0] : memref<8x256xf32, #tpu.memory_space<vmem>>, vector<8x256xf32>
    %c0_1 = arith.constant 0 : index
    %c0_2 = arith.constant 0 : index
    %1 = vector.load %arg3[%c0_1, %c0_2] : memref<8x256xf32, #tpu.memory_space<vmem>>, vector<8x256xf32>
    %2 = math.absf %0 : vector<8x256xf32>
    %cst = arith.constant 0.000000e+00 : f32
    %3 = vector.broadcast %cst : f32 to vector<8x256xf32>
    %4 = arith.subf %3, %2 : vector<8x256xf32>
    %5 = math.exp %4 : vector<8x256xf32>
    %cst_3 = arith.constant 0.000000e+00 : f32
    %6 = vector.broadcast %cst_3 : f32 to vector<8x256xf32>
    %7 = arith.maximumf %0, %6 : vector<8x256xf32>
    %8 = arith.mulf %0, %1 : vector<8x256xf32>
    %9 = arith.subf %7, %8 : vector<8x256xf32>
    %10 = math.log1p %5 : vector<8x256xf32>
    %11 = arith.addf %9, %10 : vector<8x256xf32>
    %cst_4 = arith.constant 0.000000e+00 : f32
    %12 = vector.broadcast %cst_4 : f32 to vector<8x256xf32>
    %13 = arith.subf %12, %11 : vector<8x256xf32>
    %14 = math.exp %13 : vector<8x256xf32>
    %cst_5 = arith.constant 1.000000e+00 : f32
    %15 = vector.broadcast %cst_5 : f32 to vector<8x256xf32>
    %16 = arith.subf %15, %14 : vector<8x256xf32>
    %cst_6 = arith.constant 0.000000e+00 : f32
    %17 = vector.broadcast %cst_6 : f32 to vector<8x256xf32>
    %18 = arith.maximumf %16, %17 : vector<8x256xf32>
    %19 = arith.mulf %18, %18 : vector<8x256xf32>
    %cst_7 = arith.constant 2.500000e-01 : f32
    %20 = vector.broadcast %cst_7 : f32 to vector<8x256xf32>
    %21 = arith.mulf %20, %19 : vector<8x256xf32>
    %22 = arith.mulf %21, %11 : vector<8x256xf32>
    %cst_8 = arith.constant dense<0.000000e+00> : vector<256xf32>
    %23 = vector.multi_reduction <add>, %22, %cst_8 [0] : vector<8x256xf32> to vector<256xf32>
    %24 = vector.shape_cast %23 : vector<256xf32> to vector<1x1x256xf32>
    %c0_9 = arith.constant 0 : index
    %c0_10 = arith.constant 0 : index
    %c0_11 = arith.constant 0 : index
    %25 = vector.load %arg4[%c0_9, %c0_10, %c0_11] : memref<1x1x256xf32, #tpu.memory_space<vmem>>, vector<1x1x256xf32>
    tpu.vector_store %arg4[%c0_9, %c0_10, %c0_11], %24 {strides = array<i32>} : memref<1x1x256xf32, #tpu.memory_space<vmem>>, vector<1x1x256xf32>,
    return
  }
  func.func @transform_0(%arg0: i32, %arg1: i32) -> (i32, i32) {
    %c0_i32 = arith.constant 0 : i32
    return %arg0, %arg1 : i32, i32
  }
  func.func @transform_1(%arg0: i32, %arg1: i32) -> (i32, i32) {
    %c0_i32 = arith.constant 0 : i32
    return %arg0, %arg1 : i32, i32
  }
  func.func @transform_2(%arg0: i32, %arg1: i32) -> (i32, i32, i32) {
    %c1_i32 = arith.constant 1 : i32
    %0 = arith.muli %arg0, %c1_i32 : i32
    %1 = arith.addi %0, %arg1 : i32
    %c0_i32 = arith.constant 0 : i32
    %c0_i32_0 = arith.constant 0 : i32
    %c0_i32_1 = arith.constant 0 : i32
    return %1, %c0_i32, %c0_i32_0 : i32, i32, i32
  }
}

</mosaic_0001>

<llo_original>
// kernel: tpu_custom_call.1
$region0: #{tpu_custom_call.1}
  #allocation0 [shape = 'u32[]', space=smem, size = 0x4, offset = 0x4, fixed_abs, tag = 'smem constant byte address 0x4 - core index']
  #allocation1 [shape = 'u32[144,128]{1,0:T(1,128)}', space=vmem, size = 0x12000, scoped, tag = 'internal scratch']
  %s0 = inlined_call_operand.hbm [shape: f32[16,256], index: 0, kind: input, shape index: {}]
  %s1 = inlined_call_operand.hbm [shape: f32[16,256], index: 1, kind: input, shape index: {}]
  %s2 = inlined_call_operand.hbm [shape: f32[2,1,256], index: 2, kind: output, shape index: {}]
  %s3 = sld [smem:[#allocation0]]
  $region49: #{tpu_custom_call.1} parent=0
    _
  %s5 = ssub.s32 1, %s3
  %s6 = scalar_select 0, %s5, %s3
  $region1: #{tpu_custom_call.1} parent=0
    #allocation2 [shape = 'u8[16384]{0}', space=vmem, size = 0x4000, scoped, tag = 'input window, operand 0']
    #allocation3 [shape = 's32[2]{0}', space=sflag, size = 0x8, scoped, tag = 'scoped memory for tpu_custom_call.1']
    #allocation4 [shape = 's32[2]{0}', space=sflag, size = 0x8, scoped, tag = 'scoped memory for tpu_custom_call.1']
    #allocation5 [shape = 'u8[16384]{0}', space=vmem, size = 0x4000, scoped, tag = 'input window, operand 1']
    #allocation6 [shape = 's32[2]{0}', space=sflag, size = 0x8, scoped, tag = 'scoped memory for tpu_custom_call.1']
    #allocation7 [shape = 'u8[2048]{0}', space=vmem, size = 0x800, scoped, tag = 'output window, operand 0']
    %7 = vsyncpa [#allocation3], 0
    %s8 = scalar_lea.sflag [#allocation3], 1
    %9 = vsyncpa %s8, 0
    %10 = vsyncpa [#allocation6], 0
    %s11 = scalar_lea.sflag [#allocation6], 1
    %12 = vsyncpa %s11, 0
    %13 = vsyncpa [#allocation4], 0
    %s14 = scalar_lea.sflag [#allocation4], 1
    %15 = vsyncpa %s14, 0
    loop: start=0, step=1, limit=4
    $region2: #{tpu_custom_call.1} parent=1 // loop_pre_header
      _
    $region3: #{tpu_custom_call.1} parent=1 // loop_header
      %s17 = sphi 0, %s21
      %p18 = scmp.ge.s32.totalorder %s17, 4
      %s24 = sphi 0, %s36
      %s25 = sphi 0, %s32
      %s26 = sphi 0, %s24
      %s27 = sphi 0, %s25
      %s28 = sphi 0, %s26
      %s29 = sphi 0, %s27
      %s41 = sphi 0, %s43
      %s44 = sphi 0, %s41
      %s45 = sphi 0, %s44
      %s61 = sphi 0, %s45
      %s69 = sphi 0, %s71
      %s72 = sphi 0, %s69
      %s73 = sphi 0, %s72
      %s89 = sphi 0, %s73
      %s97 = sphi 0, %s99
      %s100 = sphi 0, %s97
      %s101 = sphi 0, %s100
      %s117 = sphi 0, %s101
    $region4: #{tpu_custom_call.1} parent=1 // loop_header_branch
      %20 = sbr.rel (%p18) target = $region8
    $region5: #{tpu_custom_call.1} parent=1 // loop_body
      %s22 = ssub.s32 %s17, 1
      %s23 = ssub.s32 %s17, 2
      %s30 = sadd.s32 1, %s25
      %p31 = scmp.ge.s32.totalorder %s30, 1
      %s32 = scalar_select %p31, 0, %s30
      %s33 = sadd.s32 1, %s24
      %s34 = scalar_select %p31, %s33, %s24
      %p35 = scmp.ge.s32.totalorder %s34, 2
      %s36 = scalar_select %p35, 0, %s34
      %s37 = ssub.s32 %s24, %s36
      %s38 = ssub.s32 %s25, %s32
      %s39 = sor.u32 %s37, %s38
      %p40 = scmp.eq.s32.totalorder %s39, 0
      %s42 = sadd.s32 %s41, 1
      %s43 = scalar_select %p40, %s41, %s42
      %p46 = pneg %p40
      %p47 = scmp.eq.s32.totalorder %s17, 1
      %p48 = por %p46, %p47
      %p49 = scmp.ne.s32.totalorder %s41, %s44
      %p50 = scmp.eq.s32.totalorder %s17, 0
      %p51 = por %p49, %p50
      %p52 = scmp.ne.s32.totalorder %s41, %s44
      %p53 = scmp.eq.s32.totalorder %s22, 1
      %p54 = por %p52, %p53
      %p55 = scmp.ne.s32.totalorder %s44, %s45
      %p56 = scmp.eq.s32.totalorder %s22, 0
      %p57 = por %p55, %p56
      %p58 = scmp.ne.s32.totalorder %s44, %s45
      %p59 = scmp.eq.s32.totalorder %s23, 1
      %p60 = por %p58, %p59
      %p62 = scmp.ne.s32.totalorder %s45, %s61
      %p63 = scmp.eq.s32.totalorder %s23, 0
      %p64 = por %p62, %p63
      %s65 = ssub.s32 %s24, %s36
      %s66 = ssub.s32 %s25, %s32
      %s67 = sor.u32 %s65, %s66
      %p68 = scmp.eq.s32.totalorder %s67, 0
      %s70 = sadd.s32 %s69, 1
      %s71 = scalar_select %p68, %s69, %s70
      %p74 = pneg %p68
      %p75 = scmp.eq.s32.totalorder %s17, 1
      %p76 = por %p74, %p75
      %p77 = scmp.ne.s32.totalorder %s69, %s72
      %p78 = scmp.eq.s32.totalorder %s17, 0
      %p79 = por %p77, %p78
      %p80 = scmp.ne.s32.totalorder %s69, %s72
      %p81 = scmp.eq.s32.totalorder %s22, 1
      %p82 = por %p80, %p81
      %p83 = scmp.ne.s32.totalorder %s72, %s73
      %p84 = scmp.eq.s32.totalorder %s22, 0
      %p85 = por %p83, %p84
      %p86 = scmp.ne.s32.totalorder %s72, %s73
      %p87 = scmp.eq.s32.totalorder %s23, 1
      %p88 = por %p86, %p87
      %p90 = scmp.ne.s32.totalorder %s73, %s89
      %p91 = scmp.eq.s32.totalorder %s23, 0
      %p92 = por %p90, %p91
      %s93 = sadd.s32 %s24, %s25
      %s94 = sadd.s32 %s36, %s32
      %s95 = ssub.s32 %s93, %s94
      %p96 = scmp.eq.s32.totalorder %s95, 0
      %s98 = sadd.s32 %s97, 1
      %s99 = scalar_select %p96, %s97, %s98
      %p102 = pneg %p96
      %p103 = scmp.eq.s32.totalorder %s17, 1
      %p104 = por %p102, %p103
      %p105 = scmp.ne.s32.totalorder %s97, %s100
      %p106 = scmp.eq.s32.totalorder %s17, 0
      %p107 = por %p105, %p106
      %p108 = scmp.ne.s32.totalorder %s97, %s100
      %p109 = scmp.eq.s32.totalorder %s22, 1
      %p110 = por %p108, %p109
      %p111 = scmp.ne.s32.totalorder %s100, %s101
      %p112 = scmp.eq.s32.totalorder %s22, 0
      %p113 = por %p111, %p112
      %p114 = scmp.ne.s32.totalorder %s100, %s101
      %p115 = scmp.eq.s32.totalorder %s23, 1
      %p116 = por %p114, %p115
      %p118 = scmp.ne.s32.totalorder %s101, %s117
      %p119 = scmp.eq.s32.totalorder %s23, 0
      %p120 = por %p118, %p119
      %p121 = scmp.le.s32.totalorder 1, %s17
      %p122 = scmp.lt.s32.totalorder %s17, 3
      %p123 = pnand %p121, %p122
      %p124 = pneg %p123
      // Predicated region
      $region9: #{tpu_custom_call.1} parent=5 // pred_check
        _
      $region10: #{tpu_custom_call.1} parent=5 // pred_check_branch
        %126 = sbr.rel (%p123) target = $region12
      $region11: #{tpu_custom_call.1} parent=5 // pred_region
        %s127 = ssub.s32 %s17, 1
      $region12: #{tpu_custom_call.1} parent=5 // pred_fallthru
        _
      %p128 = scmp.lt.s32.totalorder %s17, 2
      // Predicated region
      $region13: #{tpu_custom_call.1} parent=5 // pred_check
        %p129 = pneg %p128
      $region14: #{tpu_custom_call.1} parent=5 // pred_check_branch
        %131 = sbr.rel (%p129) target = $region16
      $region15: #{tpu_custom_call.1} parent=5 // pred_region
        // Predicated region
        $region17: #{tpu_custom_call.1} parent=15 // pred_check
          %p132 = pneg %p51
        $region18: #{tpu_custom_call.1} parent=15 // pred_check_branch
          %134 = sbr.rel (%p132) target = $region20
        $region19: #{tpu_custom_call.1} parent=15 // pred_region
          %s135 = sand.u32 %s41, 1
          %s136 = scalar_lea.sflag [#allocation3], %s135
          %s137 = sand.u32 %s41, 1
          %s138 = smul.addr %s137, 16
          %s139 = scalar_lea.vmem [#allocation2], %s138
          %s140 = smul.u32 2, %s25
          %s142 = ssub.s32 256, 256
          %143 = vsyncadd %s136, %s142
          %s144 = smul.addr %s24, 2
          %s145 = sadd.s32 %s140, %s144
          %s146 = smul.addr %s145, 128
          %s147 = scalar_lea.hbm %s0, %s146
          %s149 = sshll.u32 %s139, 4
          %s150 = int_to_ptr.vmem [resolvable:$true] %s149
          %152 = dma.hbm_to_vmem [thread:$0]  %s147, 256, %s150, %s136
        $region20: #{tpu_custom_call.1} parent=15 // pred_fallthru
          _
        // Predicated region
        $region21: #{tpu_custom_call.1} parent=15 // pred_check
          %p153 = pneg %p79
        $region22: #{tpu_custom_call.1} parent=15 // pred_check_branch
          %155 = sbr.rel (%p153) target = $region24
        $region23: #{tpu_custom_call.1} parent=15 // pred_region
          %s156 = sand.u32 %s69, 1
          %s157 = scalar_lea.sflag [#allocation6], %s156
          %s158 = sand.u32 %s69, 1
          %s159 = smul.addr %s158, 16
          %s160 = scalar_lea.vmem [#allocation5], %s159
          %s161 = smul.u32 2, %s25
          %s163 = ssub.s32 256, 256
          %164 = vsyncadd %s157, %s163
          %s165 = smul.addr %s24, 2
          %s166 = sadd.s32 %s161, %s165
          %s167 = smul.addr %s166, 128
          %s168 = scalar_lea.hbm %s1, %s167
          %s170 = sshll.u32 %s160, 4
          %s171 = int_to_ptr.vmem [resolvable:$true] %s170
          %173 = dma.hbm_to_vmem [thread:$0]  %s168, 256, %s171, %s157
        $region24: #{tpu_custom_call.1} parent=15 // pred_fallthru
          _
      $region16: #{tpu_custom_call.1} parent=5 // pred_fallthru
        _
      %p174 = scmp.le.s32.totalorder 1, %s17
      %p175 = scmp.lt.s32.totalorder %s17, 3
      %p176 = pnand %p174, %p175
      %p177 = pneg %p176
      // Predicated region
      $region25: #{tpu_custom_call.1} parent=5 // pred_check
        _
      $region26: #{tpu_custom_call.1} parent=5 // pred_check_branch
        %179 = sbr.rel (%p176) target = $region28
      $region27: #{tpu_custom_call.1} parent=5 // pred_region
        %s180 = ssub.s32 %s17, 1
        %s181 = sand.u32 %s44, 1
        %s182 = scalar_lea.sflag [#allocation3], %s181
        %s183 = sand.u32 %s44, 1
        %s184 = smul.addr %s183, 16
        %s185 = scalar_lea.vmem [#allocation2], %s184
        // Predicated region
        $region29: #{tpu_custom_call.1} parent=27 // pred_check
          %p186 = pneg %p57
        $region30: #{tpu_custom_call.1} parent=27 // pred_check_branch
          %188 = sbr.rel (%p186) target = $region32
        $region31: #{tpu_custom_call.1} parent=27 // pred_region
          %189 = dma.done %s182, 256
        $region32: #{tpu_custom_call.1} parent=27 // pred_fallthru
          _
        %s190 = sand.u32 %s72, 1
        %s191 = scalar_lea.sflag [#allocation6], %s190
        %s192 = sand.u32 %s72, 1
        %s193 = smul.addr %s192, 16
        %s194 = scalar_lea.vmem [#allocation5], %s193
        // Predicated region
        $region33: #{tpu_custom_call.1} parent=27 // pred_check
          %p195 = pneg %p85
        $region34: #{tpu_custom_call.1} parent=27 // pred_check_branch
          %197 = sbr.rel (%p195) target = $region36
        $region35: #{tpu_custom_call.1} parent=27 // pred_region
          %198 = dma.done %s191, 256
        $region36: #{tpu_custom_call.1} parent=27 // pred_fallthru
          _
        %s199 = sand.u32 %s44, 1
        %s200 = scalar_lea.sflag [#allocation3], %s199
        %s201 = sand.u32 %s44, 1
        %s202 = smul.addr %s201, 16
        %s203 = scalar_lea.vmem [#allocation2], %s202
        %p204 = pneg %p57
        %p205 = pneg %p54
        %s206 = sand.u32 %s72, 1
        %s207 = scalar_lea.sflag [#allocation6], %s206
        %s208 = sand.u32 %s72, 1
        %s209 = smul.addr %s208, 16
        %s210 = scalar_lea.vmem [#allocation5], %s209
        %p211 = pneg %p85
        %p212 = pneg %p82
        %p213 = pneg %p113
        %p214 = pneg %p110
        %s215 = sand.u32 %s100, 1
        %s216 = scalar_lea.sflag [#allocation4], %s215
        %s217 = sand.u32 %s100, 1
        %s218 = smul.addr %s217, 2
        %s219 = scalar_lea.vmem [#allocation7], %s218
        %s220 = smul.u32 2, %s27
        %s221 = smul.u32 2, %s27
        %s222 = sadd.s32 %s26, %s27
        %v223 = vld [vmem:[%s185] sm:$0xff]
        %v224 = vld [vmem:[%s185 + $0x8] sm:$0xff]
        %v225 = vld [vmem:[%s194] sm:$0xff]
        %v226 = vld [vmem:[%s194 + $0x8] sm:$0xff]
        %v227 = vand.u32 2147483647, %v223
        %v228 = vand.u32 2147483647, %v224
        %v229 = vsub.f32 0.0, %v227
        %v230 = vsub.f32 0.0, %v228
        %v231 = vmul.f32 %v229, 1.442695
        %v232 = vpow.pop %v231
        %v233 = vmul.f32 %v230, 1.442695
        %v234 = vpow.pop %v233
        %v235 = vmax.f32 %v223, 0.0
        %v236 = vmax.f32 %v224, 0.0
        %v237 = vmul.f32 %v223, %v225
        %v238 = vmul.f32 %v224, %v226
        %v239 = vsub.f32 %v235, %v237
        %v240 = vsub.f32 %v236, %v238
        %v241 = vadd.f32 %v232, 1.0
        %v242 = vlog2.pop %v241
        %v243 = vmul.f32 %v242, 0.6931472
        %v244 = vmul.f32 -0.5, %v232
        %v245 = vadd.f32 %v244, 1.0
        %v246 = vmul.f32 %v245, %v232
        %v247 = vand.u32 2147483647, %v232
        %vm248 = vcmp.lt.f32.partialorder %v247, 0.0004427343
        %v249 = vsel %vm248, %v246, %v243
        %v250 = vadd.f32 %v234, 1.0
        %v251 = vlog2.pop %v250
        %v252 = vmul.f32 %v251, 0.6931472
        %v253 = vmul.f32 -0.5, %v234
        %v254 = vadd.f32 %v253, 1.0
        %v255 = vmul.f32 %v254, %v234
        %v256 = vand.u32 2147483647, %v234
        %vm257 = vcmp.lt.f32.partialorder %v256, 0.0004427343
        %v258 = vsel %vm257, %v255, %v252
        %v259 = vadd.f32 %v239, %v249
        %v260 = vadd.f32 %v240, %v258
        %v261 = vsub.f32 0.0, %v259
        %v262 = vsub.f32 0.0, %v260
        %v263 = vmul.f32 %v261, 1.442695
        %v264 = vpow.pop %v263
        %v265 = vmul.f32 %v262, 1.442695
        %v266 = vpow.pop %v265
        %v267 = vsub.f32 1.0, %v264
        %v268 = vsub.f32 1.0, %v266
        %v269 = vmax.f32 %v267, 0.0
        %v270 = vmax.f32 %v268, 0.0
        %v271 = vmul.f32 %v269, %v269
        %v272 = vmul.f32 %v270, %v270
        %v273 = vmul.f32 %v271, 0.25
        %v274 = vmul.f32 %v272, 0.25
        %v275 = vmul.f32 %v273, %v259
        %v276 = vmul.f32 %v274, %v260
        %v277 = vrot.slane %v275, 4
        %v278 = vadd.f32 %v275, %v277
        %v279 = vrot.slane %v278, 2
        %v280 = vadd.f32 %v278, %v279
        %v281 = vrot.slane %v280, 1
        %v282 = vadd.f32 %v280, %v281
        %v283 = vrot.slane %v276, 4
        %v284 = vadd.f32 %v276, %v283
        %v285 = vrot.slane %v284, 2
        %v286 = vadd.f32 %v284, %v285
        %v287 = vrot.slane %v286, 1
        %v288 = vadd.f32 %v286, %v287
        %v291 = vcombine.low %v282, %v288
        %v293 = vunpack.c.l.s4 1966171168
        %v294 = vunpack.c.0.s8 %v293
        %v295 = vlaneseq
        %v296 = vshrl.u32 %v295, 7
        %v297 = vsub.s32 %v294, %v296
        %v298 = vrot.slane %v291, %v297
        %v300 = vunpack.c.l.s4 1966171168
        %v301 = vunpack.c.0.s8 %v300
        %v302 = vlaneseq
        %v303 = vshrl.u32 %v302, 7
        %v304 = vsub.s32 %v301, %v303
        %v305 = vrot.slane %v298, %v304
        %v307 = vlaneseq
        %vm308 = vcmp.ge.s32.totalorder %v307, 0
        %vm309 = vcmp.lt.s32.totalorder %v307, 256
        %vm310 = vmand %vm308, %vm309
        %311 = vst.msk [vmem:[%s219] sm:$0x3] %vm310, %v305
        %s312 = sand.u32 %s100, 1
        %s313 = scalar_lea.sflag [#allocation4], %s312
        %s314 = sand.u32 %s100, 1
        %s315 = smul.addr %s314, 2
        %s316 = scalar_lea.vmem [#allocation7], %s315
        // Predicated region
        $region37: #{tpu_custom_call.1} parent=27 // pred_check
          %p317 = pneg %p110
        $region38: #{tpu_custom_call.1} parent=27 // pred_check_branch
          %319 = sbr.rel (%p317) target = $region40
        $region39: #{tpu_custom_call.1} parent=27 // pred_region
          %s320 = sadd.s32 %s26, %s27
          %s322 = ssub.s32 32, 32
          %323 = vsyncadd %s313, %s322
          %s324 = smul.addr %s320, 2
          %s325 = smul.addr %s324, 16
          %s326 = scalar_lea.hbm %s2, %s325
          %s328 = sshll.u32 %s316, 4
          %s329 = int_to_ptr.vmem [resolvable:$true] %s328
          %331 = dma.vmem_to_hbm [thread:$0]  %s329, 32, %s326, %s313
        $region40: #{tpu_custom_call.1} parent=27 // pred_fallthru
          _
      $region28: #{tpu_custom_call.1} parent=5 // pred_fallthru
        _
      %p332 = scmp.le.s32.totalorder 2, %s17
      // Predicated region
      $region41: #{tpu_custom_call.1} parent=5 // pred_check
        %p333 = pneg %p332
      $region42: #{tpu_custom_call.1} parent=5 // pred_check_branch
        %335 = sbr.rel (%p333) target = $region44
      $region43: #{tpu_custom_call.1} parent=5 // pred_region
        %s336 = ssub.s32 %s17, 2
        // Predicated region
        $region45: #{tpu_custom_call.1} parent=43 // pred_check
          %p337 = pneg %p116
        $region46: #{tpu_custom_call.1} parent=43 // pred_check_branch
          %339 = sbr.rel (%p337) target = $region48
        $region47: #{tpu_custom_call.1} parent=43 // pred_region
          %s340 = sand.u32 %s101, 1
          %s341 = scalar_lea.sflag [#allocation4], %s340
          %s342 = sand.u32 %s101, 1
          %s343 = smul.addr %s342, 2
          %s344 = scalar_lea.vmem [#allocation7], %s343
          %345 = dma.done %s341, 32
        $region48: #{tpu_custom_call.1} parent=43 // pred_fallthru
          _
      $region44: #{tpu_custom_call.1} parent=5 // pred_fallthru
        _
    $region6: #{tpu_custom_call.1} parent=1 // loop_footer
      %s21 = sadd.s32 1, %s17
    $region7: #{tpu_custom_call.1} parent=1 // loop_footer_branch
      %16 = sbr.rel target = $region3
    $region8: #{tpu_custom_call.1} parent=1 // loop_exit
      _
    %346 = vsyncpa [#allocation3], 1
    %s347 = scalar_lea.sflag [#allocation3], 1
    %348 = vsyncpa %s347, 1
    %349 = vsyncpa [#allocation6], 1
    %s350 = scalar_lea.sflag [#allocation6], 1
    %351 = vsyncpa %s350, 1
    %352 = vsyncpa [#allocation4], 1
    %s353 = scalar_lea.sflag [#allocation4], 1
    %354 = vsyncpa %s353, 1

</llo_original>
